<compile_context>
chip_gen: v5e
topology: v5e:2x2
jax: 0.10.0
libtpu: 0.0.40
codegen_flags: <defaults>
</compile_context>

<pallas_src>
import functools
import string

import numpy as np
import jax
import jax.numpy as jnp
from jax.experimental import pallas as pl
from jax.experimental.pallas import tpu as pltpu


OUT_PAD = 128  # lane-dense output row width (first max_output_len lanes are the tokens)


# ----------------------------- string utilities (verbatim semantics) ----------
def clean(x):
    return x.replace('<pad>', '').replace('</s>', '').strip().lower()


# ----------------------------- Pallas kernel ----------------------------------
def _seq2seq_generate_kernel(hist_ref, enc_tab_ref, w_enc_ref, dec_w_ref, w_out_ref,
                             out_ref, *, t_out):
    """Pooled encoder + greedy autoregressive decoder, fully in-kernel.

    hist_ref:    [1, V]  f32   per-query token histogram, pre-scaled by 1/n_valid
    enc_tab_ref: [V, D]  f32   relu(embed @ w_enc)        (precomputed at init)
    w_enc_ref:   [D, D]  f32   shared encoder/decoder projection
    dec_w_ref:   [V, D]  f32   dec_embed @ w_enc          (precomputed at init)
    w_out_ref:   [D, V]  f32   output (vocab) projection
    out_ref:     [1, OUT_PAD] int32   generated token ids (first t_out lanes)
    """
    V, D = enc_tab_ref.shape

    hist = hist_ref[...]                               # [1, V]
    enc_tab = enc_tab_ref[...]                         # [V, D]
    w_enc = w_enc_ref[...]                             # [D, D]
    dec_w = dec_w_ref[...]                             # [V, D]
    w_out = w_out_ref[...]                             # [D, V]

    # --- masked-mean-pooled encoder state: exact algebraic rewrite of
    #     (mask @ relu((onehot @ embed) @ w_enc)) / n_valid  as one lane-dense dot.
    pooled = jnp.dot(hist, enc_tab, preferred_element_type=jnp.float32)       # [1, D]

    # --- greedy transition table: logits for ALL possible previous tokens in one shot
    #     hdec(prev=i) = relu(pooled@W + dec_embed[i]@W)   (loop-invariant matmuls hoisted;
    #     dec_embed@W precomputed on host)
    pooled_enc = jnp.dot(pooled, w_enc, preferred_element_type=jnp.float32)   # [1, D]
    hdec_all = jnp.maximum(dec_w + pooled_enc, 0.0)                           # [V, D]
    logits_all = jnp.dot(hdec_all, w_out, preferred_element_type=jnp.float32) # [V, V]

    # batched first-max argmax over lanes -> next-token column, done ONCE
    # (max + masked-min-index; kept instead of jnp.argmax for guaranteed Mosaic lowering)
    iota_vv = jax.lax.broadcasted_iota(jnp.int32, (V, V), 1)                  # [V, V]
    m = jnp.max(logits_all, axis=-1, keepdims=True)                           # [V, 1]
    cand = jnp.where(logits_all == m, iota_vv, V)                             # [V, V]
    next_col = jnp.min(cand, axis=-1, keepdims=True)                          # [V, 1] int32

    # --- 8-step walk over the transition table: pure int32 VPU select + tiny reduce
    #     per step (no MXU, no f32<->int32 casts).
    iota_col = jax.lax.broadcasted_iota(jnp.int32, (V, 1), 0)                 # [V, 1]
    lane_iota = jax.lax.broadcasted_iota(jnp.int32, (1, OUT_PAD), 1)          # [1, 128]
    prev_id = jnp.zeros((1, 1), jnp.int32)             # decoder start token = <pad>(0)
    out_row = jnp.zeros((1, OUT_PAD), jnp.int32)
    for t in range(t_out):
        sel = jnp.where(iota_col == prev_id, next_col, 0)                     # [V, 1]
        nxt = jnp.sum(sel, axis=0, keepdims=True)                             # [1, 1]
        out_row = jnp.where(lane_iota == t, nxt, out_row)                     # scatter
        prev_id = nxt

    out_ref[...] = out_row                                                    # lane-dense vst


def pallas_generate(hist_row, enc_tab, w_enc, dec_w, w_out, max_output_len):
    kernel = functools.partial(_seq2seq_generate_kernel, t_out=max_output_len)
    vmem = pl.BlockSpec(memory_space=pltpu.MemorySpace.VMEM)
    return pl.pallas_call(
        kernel,
        out_shape=jax.ShapeDtypeStruct((1, OUT_PAD), jnp.int32),
        in_specs=[vmem, vmem, vmem, vmem, vmem],
        out_specs=pl.BlockSpec(memory_space=pltpu.MemorySpace.VMEM),
    )(hist_row, enc_tab, w_enc, dec_w, w_out)


# Single jitted dispatch for the whole generate path (amortizes launch overhead).
@functools.partial(jax.jit, static_argnames=('max_output_len',))
def _generate_jit(hist_row, enc_tab, w_enc, dec_w, w_out, max_output_len):
    return pallas_generate(hist_row.astype(jnp.float32), enc_tab, w_enc, dec_w, w_out,
                           max_output_len)


# ----------------------------- synthetic tokenizer -----------------------------
class CharTokenizer:
    PAD_ID = 0
    EOS_ID = 1

    def __init__(self, vocab_size=128):
        self.vocab_size = vocab_size
        chars = string.printable
        self.char_to_id = {c: (i % (vocab_size - 2)) + 2 for i, c in enumerate(chars)}
        self.id_to_char = {}
        for c, i in self.char_to_id.items():
            self.id_to_char.setdefault(i, c)

    def encode_plus(self, text, pad_to_max_length=True, truncation=True, max_length=64):
        ids = [self.char_to_id.get(c, 2) for c in text]
        if truncation:
            ids = ids[: max_length - 1]
        ids = ids + [self.EOS_ID]
        attn = [1] * len(ids)
        if pad_to_max_length:
            pad_n = max_length - len(ids)
            ids = ids + [self.PAD_ID] * pad_n
            attn = attn + [0] * pad_n
        return {'input_ids': ids, 'attention_mask': attn}

    def decode(self, ids):
        out = []
        for i in np.asarray(ids).reshape(-1).tolist():
            i = int(i)
            if i == self.PAD_ID:
                out.append('<pad>')
            elif i == self.EOS_ID:
                out.append('</s>')
            else:
                out.append(self.id_to_char.get(i, ''))
        return ''.join(out)


# ----------------------------- synthetic seq2seq model -------------------------
class TinySeq2SeqModel:
    def __init__(self, key, vocab_size=128, hidden=32, max_output_len=8):
        k1, k2, k3, k4 = jax.random.split(key, 4)
        s = 1.0 / np.sqrt(hidden)
        self.vocab_size = vocab_size
        self.hidden = hidden
        self.max_output_len = max_output_len
        self.embed = 0.1 * jax.random.normal(k1, (vocab_size, hidden), jnp.float32)
        self.w_enc = s * jax.random.normal(k2, (hidden, hidden), jnp.float32)
        self.dec_embed = 0.1 * jax.random.normal(k3, (vocab_size, hidden), jnp.float32)
        self.w_out = s * jax.random.normal(k4, (hidden, vocab_size), jnp.float32)
        # Static host-side precompute (once): fused encoder table and decoder projection.
        self.relu_enc_table = jnp.maximum(
            jnp.dot(self.embed, self.w_enc), 0.0)                   # [V, D]
        self.dec_w = jnp.dot(self.dec_embed, self.w_enc)            # [V, D]

    def _hist(self, input_ids, attention_mask):
        """Per-query token histogram, pre-scaled by 1/n_valid (tokenize-time host work)."""
        ids = np.asarray(input_ids, np.int64).reshape(-1)
        mask = np.asarray(attention_mask, np.float32).reshape(-1)
        n_valid = max(float(mask.sum()), 1.0)
        valid_ids = ids[mask > 0]
        hist = np.bincount(valid_ids, minlength=self.vocab_size).astype(np.float32)
        hist = hist[: self.vocab_size] / n_valid
        return hist.reshape(1, self.vocab_size)

    def generate(self, input_ids, attention_mask):
        # Exactly ONE per-query H2D transfer (the [1,V] histogram row); weights are
        # device-resident from init.
        hist_row = jnp.asarray(self._hist(input_ids, attention_mask))
        out_row = _generate_jit(hist_row, self.relu_enc_table, self.w_enc, self.dec_w,
                                self.w_out, max_output_len=self.max_output_len)
        # np.asarray synchronizes; slice the lane-dense padded row to T tokens on host.
        return np.asarray(out_row)[:, : self.max_output_len]            # [1, T]


# ----------------------------- Predictor (mirrors the PyTorch module) ----------
class Predictor:
    def __init__(self, tokenizer, model, input_max_len=64):
        self.tokenizer = tokenizer
        self.model = model
        self.input_max_len = input_max_len

    def format_input(self, question, context):
        return f'question: {question} context: {context} </s>'

    def encode(self, input):
        return self.tokenizer.encode_plus(
            input, pad_to_max_length=True, truncation=True,
            max_length=self.input_max_len)

    def decode(self, output):
        return self.tokenizer.decode(output)

    def generate(self, input_ids, attention_mask):
        ans_encoded = self.model.generate(input_ids=input_ids,
                                          attention_mask=attention_mask)
        return clean(''.join([self.decode(x) for x in ans_encoded]))

    def inference(self, question='What is the pythagorean theorem?',
                  context='there are 8 planets in the solar system.'):
        return self.generate(**self.encode(self.format_input(question, context)))

    def forward(self, question, context):
        return self.inference(question, context)

    __call__ = forward


# TODO(synk): the real HF tokenizer (BPE) and pretrained T5 weights/beam generate have no
# Pallas equivalent; they are replaced by a deterministic char tokenizer + synthetic weights.

if __name__ == "__main__":
    key = jax.random.PRNGKey(0)
    tokenizer = CharTokenizer(vocab_size=128)
    model = TinySeq2SeqModel(key, vocab_size=128, hidden=32, max_output_len=8)
    predictor = Predictor(tokenizer, model, input_max_len=64)

    # Direct kernel smoke-run (block on the device result).
    enc = predictor.encode(predictor.format_input(
        'What is the pythagorean theorem?',
        'there are 8 planets in the solar system.'))
    hist_row = jnp.asarray(model._hist(enc['input_ids'], enc['attention_mask']))
    out = _generate_jit(hist_row, model.relu_enc_table, model.w_enc, model.dec_w,
                        model.w_out, max_output_len=model.max_output_len)
    jax.block_until_ready(out)

    # Full forward (string -> string), same path as the PyTorch module.
    answer = predictor.forward('What is the pythagorean theorem?',
                               'there are 8 planets in the solar system.')
    assert isinstance(answer, str)
    print("KERNEL_OK")
</pallas_src>

<mosaic_0001>
module attributes {stable_mosaic.version = 11 : i64} {
  func.func @_seq2seq_generate_kernel(%arg0: memref<1x128xf32, #tpu.memory_space<vmem>>, %arg1: memref<128x32xf32, #tpu.memory_space<vmem>>, %arg2: memref<32x32xf32, #tpu.memory_space<vmem>>, %arg3: memref<128x32xf32, #tpu.memory_space<vmem>>, %arg4: memref<32x128xf32, #tpu.memory_space<vmem>>, %arg5: memref<1x128xi32, #tpu.memory_space<vmem>>) attributes {dimension_semantics = [], scalar_prefetch = 0 : i64, scratch_operands = 0 : i64, tpu.core_type = #tpu.core_type<tc>} {
    %c0 = arith.constant 0 : index
    %c0_0 = arith.constant 0 : index
    %0 = vector.load %arg0[%c0, %c0_0] : memref<1x128xf32, #tpu.memory_space<vmem>>, vector<1x128xf32>
    %c0_1 = arith.constant 0 : index
    %c0_2 = arith.constant 0 : index
    %1 = vector.load %arg1[%c0_1, %c0_2] : memref<128x32xf32, #tpu.memory_space<vmem>>, vector<128x32xf32>
    %c0_3 = arith.constant 0 : index
    %c0_4 = arith.constant 0 : index
    %2 = vector.load %arg2[%c0_3, %c0_4] : memref<32x32xf32, #tpu.memory_space<vmem>>, vector<32x32xf32>
    %c0_5 = arith.constant 0 : index
    %c0_6 = arith.constant 0 : index
    %3 = vector.load %arg3[%c0_5, %c0_6] : memref<128x32xf32, #tpu.memory_space<vmem>>, vector<128x32xf32>
    %c0_7 = arith.constant 0 : index
    %c0_8 = arith.constant 0 : index
    %4 = vector.load %arg4[%c0_7, %c0_8] : memref<32x128xf32, #tpu.memory_space<vmem>>, vector<32x128xf32>
    %cst = arith.constant dense<0.000000e+00> : vector<1x32xf32>
    %5 = tpu.matmul %0, %1, %cst {dimension_numbers = #tpu.dot_dimension_numbers<[1], [0], [0], [1], [0, 0, 1, 1], [], []>} : vector<1x128xf32>, vector<128x32xf32>, vector<1x32xf32> -> vector<1x32xf32>
    %cst_9 = arith.constant dense<0.000000e+00> : vector<1x32xf32>
    %6 = tpu.matmul %5, %2, %cst_9 {dimension_numbers = #tpu.dot_dimension_numbers<[1], [0], [0], [1], [0, 0, 1, 1], [], []>} : vector<1x32xf32>, vector<32x32xf32>, vector<1x32xf32> -> vector<1x32xf32>
    %7 = vector.broadcast %6 : vector<1x32xf32> to vector<128x32xf32>
    %8 = arith.addf %3, %7 : vector<128x32xf32>
    %cst_10 = arith.constant 0.000000e+00 : f32
    %9 = vector.broadcast %cst_10 : f32 to vector<128x32xf32>
    %10 = arith.maximumf %8, %9 : vector<128x32xf32>
    %cst_11 = arith.constant dense<0.000000e+00> : vector<128x128xf32>
    %11 = tpu.matmul %10, %4, %cst_11 {dimension_numbers = #tpu.dot_dimension_numbers<[1], [0], [0], [1], [0, 0, 1, 1], [], []>} : vector<128x32xf32>, vector<32x128xf32>, vector<128x128xf32> -> vector<128x128xf32>
    %12 = tpu.iota {dimensions = array<i32: 1>} : vector<128x128xi32>
    %cst_12 = arith.constant dense<0xFF800000> : vector<128xf32>
    %13 = vector.multi_reduction <maximumf>, %11, %cst_12 [1] : vector<128x128xf32> to vector<128xf32>
    %14 = vector.shape_cast %13 : vector<128xf32> to vector<128x1xf32>
    %15 = vector.broadcast %14 : vector<128x1xf32> to vector<128x128xf32>
    %16 = arith.cmpf oeq, %11, %15 : vector<128x128xf32>
    %c128_i32 = arith.constant 128 : i32
    %17 = vector.broadcast %c128_i32 : i32 to vector<128x128xi32>
    %18 = arith.select %16, %12, %17 : vector<128x128xi1>, vector<128x128xi32>
    %cst_13 = arith.constant dense<2147483647> : vector<128xi32>
    %19 = vector.multi_reduction <minsi>, %18, %cst_13 [1] : vector<128x128xi32> to vector<128xi32>
    %20 = vector.shape_cast %19 : vector<128xi32> to vector<128x1xi32>
    %21 = tpu.iota {dimensions = array<i32: 0>} : vector<128x1xi32>
    %22 = tpu.iota {dimensions = array<i32: 1>} : vector<1x128xi32>
    %c0_i32 = arith.constant 0 : i32
    %23 = vector.broadcast %c0_i32 : i32 to vector<1x1xi32>
    %c0_i32_14 = arith.constant 0 : i32
    %24 = vector.broadcast %c0_i32_14 : i32 to vector<1x128xi32>
    %25 = vector.broadcast %23 : vector<1x1xi32> to vector<128x1xi32>
    %26 = arith.cmpi eq, %21, %25 : vector<128x1xi32>
    %c0_i32_15 = arith.constant 0 : i32
    %27 = vector.broadcast %c0_i32_15 : i32 to vector<128x1xi32>
    %28 = arith.select %26, %20, %27 : vector<128x1xi1>, vector<128x1xi32>
    %cst_16 = arith.constant dense<0> : vector<1xi32>
    %29 = vector.multi_reduction <add>, %28, %cst_16 [0] : vector<128x1xi32> to vector<1xi32>
    %30 = vector.shape_cast %29 : vector<1xi32> to vector<1x1xi32>
    %c0_i32_17 = arith.constant 0 : i32
    %31 = vector.broadcast %c0_i32_17 : i32 to vector<1x128xi32>
    %32 = arith.cmpi eq, %22, %31 : vector<1x128xi32>
    %33 = vector.shape_cast %30 : vector<1x1xi32> to vector<1x1xi32>
    %34 = vector.broadcast %33 : vector<1x1xi32> to vector<1x128xi32>
    %35 = arith.select %32, %34, %24 : vector<1x128xi1>, vector<1x128xi32>
    %36 = vector.broadcast %30 : vector<1x1xi32> to vector<128x1xi32>
    %37 = arith.cmpi eq, %21, %36 : vector<128x1xi32>
    %c0_i32_18 = arith.constant 0 : i32
    %38 = vector.broadcast %c0_i32_18 : i32 to vector<128x1xi32>
    %39 = arith.select %37, %20, %38 : vector<128x1xi1>, vector<128x1xi32>
    %cst_19 = arith.constant dense<0> : vector<1xi32>
    %40 = vector.multi_reduction <add>, %39, %cst_19 [0] : vector<128x1xi32> to vector<1xi32>
    %41 = vector.shape_cast %40 : vector<1xi32> to vector<1x1xi32>
    %c1_i32 = arith.constant 1 : i32
    %42 = vector.broadcast %c1_i32 : i32 to vector<1x128xi32>
    %43 = arith.cmpi eq, %22, %42 : vector<1x128xi32>
    %44 = vector.shape_cast %41 : vector<1x1xi32> to vector<1x1xi32>
    %45 = vector.broadcast %44 : vector<1x1xi32> to vector<1x128xi32>
    %46 = arith.select %43, %45, %35 : vector<1x128xi1>, vector<1x128xi32>
    %47 = vector.broadcast %41 : vector<1x1xi32> to vector<128x1xi32>
    %48 = arith.cmpi eq, %21, %47 : vector<128x1xi32>
    %c0_i32_20 = arith.constant 0 : i32
    %49 = vector.broadcast %c0_i32_20 : i32 to vector<128x1xi32>
    %50 = arith.select %48, %20, %49 : vector<128x1xi1>, vector<128x1xi32>
    %cst_21 = arith.constant dense<0> : vector<1xi32>
    %51 = vector.multi_reduction <add>, %50, %cst_21 [0] : vector<128x1xi32> to vector<1xi32>
    %52 = vector.shape_cast %51 : vector<1xi32> to vector<1x1xi32>
    %c2_i32 = arith.constant 2 : i32
    %53 = vector.broadcast %c2_i32 : i32 to vector<1x128xi32>
    %54 = arith.cmpi eq, %22, %53 : vector<1x128xi32>
    %55 = vector.shape_cast %52 : vector<1x1xi32> to vector<1x1xi32>
    %56 = vector.broadcast %55 : vector<1x1xi32> to vector<1x128xi32>
    %57 = arith.select %54, %56, %46 : vector<1x128xi1>, vector<1x128xi32>
    %58 = vector.broadcast %52 : vector<1x1xi32> to vector<128x1xi32>
    %59 = arith.cmpi eq, %21, %58 : vector<128x1xi32>
    %c0_i32_22 = arith.constant 0 : i32
    %60 = vector.broadcast %c0_i32_22 : i32 to vector<128x1xi32>
    %61 = arith.select %59, %20, %60 : vector<128x1xi1>, vector<128x1xi32>
    %cst_23 = arith.constant dense<0> : vector<1xi32>
    %62 = vector.multi_reduction <add>, %61, %cst_23 [0] : vector<128x1xi32> to vector<1xi32>
    %63 = vector.shape_cast %62 : vector<1xi32> to vector<1x1xi32>
    %c3_i32 = arith.constant 3 : i32
    %64 = vector.broadcast %c3_i32 : i32 to vector<1x128xi32>
    %65 = arith.cmpi eq, %22, %64 : vector<1x128xi32>
    %66 = vector.shape_cast %63 : vector<1x1xi32> to vector<1x1xi32>
    %67 = vector.broadcast %66 : vector<1x1xi32> to vector<1x128xi32>
    %68 = arith.select %65, %67, %57 : vector<1x128xi1>, vector<1x128xi32>
    %69 = vector.broadcast %63 : vector<1x1xi32> to vector<128x1xi32>
    %70 = arith.cmpi eq, %21, %69 : vector<128x1xi32>
    %c0_i32_24 = arith.constant 0 : i32
    %71 = vector.broadcast %c0_i32_24 : i32 to vector<128x1xi32>
    %72 = arith.select %70, %20, %71 : vector<128x1xi1>, vector<128x1xi32>
    %cst_25 = arith.constant dense<0> : vector<1xi32>
    %73 = vector.multi_reduction <add>, %72, %cst_25 [0] : vector<128x1xi32> to vector<1xi32>
    %74 = vector.shape_cast %73 : vector<1xi32> to vector<1x1xi32>
    %c4_i32 = arith.constant 4 : i32
    %75 = vector.broadcast %c4_i32 : i32 to vector<1x128xi32>
    %76 = arith.cmpi eq, %22, %75 : vector<1x128xi32>
    %77 = vector.shape_cast %74 : vector<1x1xi32> to vector<1x1xi32>
    %78 = vector.broadcast %77 : vector<1x1xi32> to vector<1x128xi32>
    %79 = arith.select %76, %78, %68 : vector<1x128xi1>, vector<1x128xi32>
    %80 = vector.broadcast %74 : vector<1x1xi32> to vector<128x1xi32>
    %81 = arith.cmpi eq, %21, %80 : vector<128x1xi32>
    %c0_i32_26 = arith.constant 0 : i32
    %82 = vector.broadcast %c0_i32_26 : i32 to vector<128x1xi32>
    %83 = arith.select %81, %20, %82 : vector<128x1xi1>, vector<128x1xi32>
    %cst_27 = arith.constant dense<0> : vector<1xi32>
    %84 = vector.multi_reduction <add>, %83, %cst_27 [0] : vector<128x1xi32> to vector<1xi32>
    %85 = vector.shape_cast %84 : vector<1xi32> to vector<1x1xi32>
    %c5_i32 = arith.constant 5 : i32
    %86 = vector.broadcast %c5_i32 : i32 to vector<1x128xi32>
    %87 = arith.cmpi eq, %22, %86 : vector<1x128xi32>
    %88 = vector.shape_cast %85 : vector<1x1xi32> to vector<1x1xi32>
    %89 = vector.broadcast %88 : vector<1x1xi32> to vector<1x128xi32>
    %90 = arith.select %87, %89, %79 : vector<1x128xi1>, vector<1x128xi32>
    %91 = vector.broadcast %85 : vector<1x1xi32> to vector<128x1xi32>
    %92 = arith.cmpi eq, %21, %91 : vector<128x1xi32>
    %c0_i32_28 = arith.constant 0 : i32
    %93 = vector.broadcast %c0_i32_28 : i32 to vector<128x1xi32>
    %94 = arith.select %92, %20, %93 : vector<128x1xi1>, vector<128x1xi32>
    %cst_29 = arith.constant dense<0> : vector<1xi32>
    %95 = vector.multi_reduction <add>, %94, %cst_29 [0] : vector<128x1xi32> to vector<1xi32>
    %96 = vector.shape_cast %95 : vector<1xi32> to vector<1x1xi32>
    %c6_i32 = arith.constant 6 : i32
    %97 = vector.broadcast %c6_i32 : i32 to vector<1x128xi32>
    %98 = arith.cmpi eq, %22, %97 : vector<1x128xi32>
    %99 = vector.shape_cast %96 : vector<1x1xi32> to vector<1x1xi32>
    %100 = vector.broadcast %99 : vector<1x1xi32> to vector<1x128xi32>
    %101 = arith.select %98, %100, %90 : vector<1x128xi1>, vector<1x128xi32>
    %102 = vector.broadcast %96 : vector<1x1xi32> to vector<128x1xi32>
    %103 = arith.cmpi eq, %21, %102 : vector<128x1xi32>
    %c0_i32_30 = arith.constant 0 : i32
    %104 = vector.broadcast %c0_i32_30 : i32 to vector<128x1xi32>
    %105 = arith.select %103, %20, %104 : vector<128x1xi1>, vector<128x1xi32>
    %cst_31 = arith.constant dense<0> : vector<1xi32>
    %106 = vector.multi_reduction <add>, %105, %cst_31 [0] : vector<128x1xi32> to vector<1xi32>
    %107 = vector.shape_cast %106 : vector<1xi32> to vector<1x1xi32>
    %c7_i32 = arith.constant 7 : i32
    %108 = vector.broadcast %c7_i32 : i32 to vector<1x128xi32>
    %109 = arith.cmpi eq, %22, %108 : vector<1x128xi32>
    %110 = vector.shape_cast %107 : vector<1x1xi32> to vector<1x1xi32>
    %111 = vector.broadcast %110 : vector<1x1xi32> to vector<1x128xi32>
    %112 = arith.select %109, %111, %101 : vector<1x128xi1>, vector<1x128xi32>
    %c0_32 = arith.constant 0 : index
    %c0_33 = arith.constant 0 : index
    %113 = vector.load %arg5[%c0_32, %c0_33] : memref<1x128xi32, #tpu.memory_space<vmem>>, vector<1x128xi32>
    tpu.vector_store %arg5[%c0_32, %c0_33], %112 {strides = array<i32>} : memref<1x128xi32, #tpu.memory_space<vmem>>, vector<1x128xi32>,
    return
  }
}

</mosaic_0001>

<llo_original>
// kernel: _generate_jit.1
$region0: #{_generate_jit.1}
  #allocation0 [shape = 'u32[]', space=smem, size = 0x4, offset = 0x4, fixed_abs, tag = 'smem constant byte address 0x4 - core index']
  #allocation1 [shape = 'u32[72,128]{1,0:T(1,128)}', space=vmem, size = 0x9000, scoped, tag = 'internal scratch']
  %s0 = inlined_call_operand.vmem [shape: f32[1,128], index: 0, kind: input, shape index: {}]
  %s1 = inlined_call_operand.vmem [shape: f32[128,32], index: 1, kind: input, shape index: {}]
  %s2 = inlined_call_operand.vmem [shape: f32[32,32], index: 2, kind: input, shape index: {}]
  %s3 = inlined_call_operand.vmem [shape: f32[128,32], index: 3, kind: input, shape index: {}]
  %s4 = inlined_call_operand.vmem [shape: f32[32,128], index: 4, kind: input, shape index: {}]
  %s5 = inlined_call_operand.hbm [shape: s32[1,128], index: 5, kind: output, shape index: {}]
  %s6 = sld [smem:[#allocation0]]
  $region30: #{_generate_jit.1} parent=0
    _
  %s8 = ssub.s32 1, %s6
  %s9 = scalar_select 0, %s8, %s6
  $region1: #{_generate_jit.1} parent=0
    #allocation2 [shape = 'u8[512]{0}', space=vmem, size = 0x400, scoped, tag = 'output window, operand 0, single buffered']
    #allocation3 [shape = 's32[1]{0}', space=sflag, size = 0x4, scoped, tag = 'scoped memory for _generate_jit.1']
    %10 = vsyncpa [#allocation3], 0
    // Predicated region
    $region2: #{_generate_jit.1} parent=1 // pred_check
      _
    $region3: #{_generate_jit.1} parent=1 // pred_check_branch
      %12 = sbr.rel (0) target = $region5
    $region4: #{_generate_jit.1} parent=1 // pred_region
      _
    $region5: #{_generate_jit.1} parent=1 // pred_fallthru
      _
    // Predicated region
    $region6: #{_generate_jit.1} parent=1 // pred_check
      _
    $region7: #{_generate_jit.1} parent=1 // pred_check_branch
      %14 = sbr.rel (0) target = $region9
    $region8: #{_generate_jit.1} parent=1 // pred_region
      _
    $region9: #{_generate_jit.1} parent=1 // pred_fallthru
      _
    // Predicated region
    $region10: #{_generate_jit.1} parent=1 // pred_check
      _
    $region11: #{_generate_jit.1} parent=1 // pred_check_branch
      %16 = sbr.rel (0) target = $region13
    $region12: #{_generate_jit.1} parent=1 // pred_region
      _
    $region13: #{_generate_jit.1} parent=1 // pred_fallthru
      _
    // Predicated region
    $region14: #{_generate_jit.1} parent=1 // pred_check
      _
    $region15: #{_generate_jit.1} parent=1 // pred_check_branch
      %18 = sbr.rel (0) target = $region17
    $region16: #{_generate_jit.1} parent=1 // pred_region
      _
    $region17: #{_generate_jit.1} parent=1 // pred_fallthru
      _
    // Predicated region
    $region18: #{_generate_jit.1} parent=1 // pred_check
      _
    $region19: #{_generate_jit.1} parent=1 // pred_check_branch
      %20 = sbr.rel (0) target = $region21
    $region20: #{_generate_jit.1} parent=1 // pred_region
      _
    $region21: #{_generate_jit.1} parent=1 // pred_fallthru
      _
    %v21 = vld [vmem:[%s0] sm:$0x1]
    %v22 = vld [vmem:[%s1] sm:$0xff]
    %v23 = vld [vmem:[%s1 + $0x8] sm:$0xff]
    %v24 = vld [vmem:[%s1 + $0x10] sm:$0xff]
    %v25 = vld [vmem:[%s1 + $0x18] sm:$0xff]
    %v26 = vld [vmem:[%s1 + $0x20] sm:$0xff]
    %v27 = vld [vmem:[%s1 + $0x28] sm:$0xff]
    %v28 = vld [vmem:[%s1 + $0x30] sm:$0xff]
    %v29 = vld [vmem:[%s1 + $0x38] sm:$0xff]
    %v30 = vld [vmem:[%s1 + $0x40] sm:$0xff]
    %v31 = vld [vmem:[%s1 + $0x48] sm:$0xff]
    %v32 = vld [vmem:[%s1 + $0x50] sm:$0xff]
    %v33 = vld [vmem:[%s1 + $0x58] sm:$0xff]
    %v34 = vld [vmem:[%s1 + $0x60] sm:$0xff]
    %v35 = vld [vmem:[%s1 + $0x68] sm:$0xff]
    %v36 = vld [vmem:[%s1 + $0x70] sm:$0xff]
    %v37 = vld [vmem:[%s1 + $0x78] sm:$0xff]
    %v38 = vld [vmem:[%s2] sm:$0xff]
    %v39 = vld [vmem:[%s2 + $0x8] sm:$0xff]
    %v40 = vld [vmem:[%s2 + $0x10] sm:$0xff]
    %v41 = vld [vmem:[%s2 + $0x18] sm:$0xff]
    %v42 = vld [vmem:[%s3] sm:$0xff]
    %v43 = vld [vmem:[%s3 + $0x8] sm:$0xff]
    %v44 = vld [vmem:[%s3 + $0x10] sm:$0xff]
    %v45 = vld [vmem:[%s3 + $0x18] sm:$0xff]
    %v46 = vld [vmem:[%s3 + $0x20] sm:$0xff]
    %v47 = vld [vmem:[%s3 + $0x28] sm:$0xff]
    %v48 = vld [vmem:[%s3 + $0x30] sm:$0xff]
    %v49 = vld [vmem:[%s3 + $0x38] sm:$0xff]
    %v50 = vld [vmem:[%s3 + $0x40] sm:$0xff]
    %v51 = vld [vmem:[%s3 + $0x48] sm:$0xff]
    %v52 = vld [vmem:[%s3 + $0x50] sm:$0xff]
    %v53 = vld [vmem:[%s3 + $0x58] sm:$0xff]
    %v54 = vld [vmem:[%s3 + $0x60] sm:$0xff]
    %v55 = vld [vmem:[%s3 + $0x68] sm:$0xff]
    %v56 = vld [vmem:[%s3 + $0x70] sm:$0xff]
    %v57 = vld [vmem:[%s3 + $0x78] sm:$0xff]
    %v58 = vld [vmem:[%s4] sm:$0xff]
    %v59 = vld [vmem:[%s4 + $0x8] sm:$0xff]
    %v60 = vld [vmem:[%s4 + $0x10] sm:$0xff]
    %v61 = vld [vmem:[%s4 + $0x18] sm:$0xff]
    %62 = vmatpush.msra.mxu0 %v37
    %63 = vmatpush.msra.mxu0 %v36
    %64 = vmatpush.msra.mxu0 %v35
    %65 = vmatpush.msra.mxu0 %v34
    %66 = vmatpush.msra.mxu0 %v33
    %67 = vmatpush.msra.mxu0 %v32
    %68 = vmatpush.msra.mxu0 %v31
    %69 = vmatpush.msra.mxu0 %v30
    %70 = vmatpush.msra.mxu0 %v29
    %71 = vmatpush.msra.mxu0 %v28
    %72 = vmatpush.msra.mxu0 %v27
    %73 = vmatpush.msra.mxu0 %v26
    %74 = vmatpush.msra.mxu0 %v25
    %75 = vmatpush.msra.mxu0 %v24
    %76 = vmatpush.msra.mxu0 %v23
    %77 = vmatpush.msra.mxu0 %v22
    %78 = vmatmul.f32.gmra.mxu0 %v21
    %v79 = vpop.f32.mrf.mxu0
    %v80 = vadd.f32 0.0, %v79
    %81 = vdwg.mxu0
    %vm82 = vcmask 261120
    %v84 = vsel %vm82, %v80, 0
    %86 = vmatpush.msra.mxu0 0.0
    %87 = vmatpush.msra.mxu0 0.0
    %88 = vmatpush.msra.mxu0 0.0
    %89 = vmatpush.msra.mxu0 0.0
    %90 = vmatpush.msra.mxu0 0.0
    %91 = vmatpush.msra.mxu0 0.0
    %92 = vmatpush.msra.mxu0 0.0
    %93 = vmatpush.msra.mxu0 0.0
    %94 = vmatpush.msra.mxu0 0.0
    %95 = vmatpush.msra.mxu0 0.0
    %96 = vmatpush.msra.mxu0 0.0
    %97 = vmatpush.msra.mxu0 0.0
    %98 = vmatpush.msra.mxu0 %v41
    %99 = vmatpush.msra.mxu0 %v40
    %100 = vmatpush.msra.mxu0 %v39
    %101 = vmatpush.msra.mxu0 %v38
    %102 = vmatmul.f32.gmra.mxu0 %v84
    %v103 = vpop.f32.mrf.mxu0
    %v104 = vadd.f32 0.0, %v103
    %105 = vdwg.mxu0
    %v106 = vperm.slane %v104, 0
    %v107 = vadd.f32 %v42, %v106
    %v108 = vadd.f32 %v43, %v106
    %v109 = vadd.f32 %v44, %v106
    %v110 = vadd.f32 %v45, %v106
    %v111 = vadd.f32 %v46, %v106
    %v112 = vadd.f32 %v47, %v106
    %v113 = vadd.f32 %v48, %v106
    %v114 = vadd.f32 %v49, %v106
    %v115 = vadd.f32 %v50, %v106
    %v116 = vadd.f32 %v51, %v106
    %v117 = vadd.f32 %v52, %v106
    %v118 = vadd.f32 %v53, %v106
    %v119 = vadd.f32 %v54, %v106
    %v120 = vadd.f32 %v55, %v106
    %v121 = vadd.f32 %v56, %v106
    %v122 = vadd.f32 %v57, %v106
    %v123 = vmax.f32 %v107, 0.0
    %v124 = vmax.f32 %v108, 0.0
    %v125 = vmax.f32 %v109, 0.0
    %v126 = vmax.f32 %v110, 0.0
    %v127 = vmax.f32 %v111, 0.0
    %v128 = vmax.f32 %v112, 0.0
    %v129 = vmax.f32 %v113, 0.0
    %v130 = vmax.f32 %v114, 0.0
    %v131 = vmax.f32 %v115, 0.0
    %v132 = vmax.f32 %v116, 0.0
    %v133 = vmax.f32 %v117, 0.0
    %v134 = vmax.f32 %v118, 0.0
    %v135 = vmax.f32 %v119, 0.0
    %v136 = vmax.f32 %v120, 0.0
    %v137 = vmax.f32 %v121, 0.0
    %v138 = vmax.f32 %v122, 0.0
    %v140 = vsel %vm82, %v123, 0
    %v143 = vsel %vm82, %v124, 0
    %v146 = vsel %vm82, %v125, 0
    %v149 = vsel %vm82, %v126, 0
    %v152 = vsel %vm82, %v127, 0
    %v155 = vsel %vm82, %v128, 0
    %v158 = vsel %vm82, %v129, 0
    %v161 = vsel %vm82, %v130, 0
    %v164 = vsel %vm82, %v131, 0
    %v167 = vsel %vm82, %v132, 0
    %v170 = vsel %vm82, %v133, 0
    %v173 = vsel %vm82, %v134, 0
    %v176 = vsel %vm82, %v135, 0
    %v179 = vsel %vm82, %v136, 0
    %v182 = vsel %vm82, %v137, 0
    %v185 = vsel %vm82, %v138, 0
    %187 = vmatpush.msra.mxu0 0.0
    %188 = vmatpush.msra.mxu0 0.0
    %189 = vmatpush.msra.mxu0 0.0
    %190 = vmatpush.msra.mxu0 0.0
    %191 = vmatpush.msra.mxu0 0.0
    %192 = vmatpush.msra.mxu0 0.0
    %193 = vmatpush.msra.mxu0 0.0
    %194 = vmatpush.msra.mxu0 0.0
    %195 = vmatpush.msra.mxu0 0.0
    %196 = vmatpush.msra.mxu0 0.0
    %197 = vmatpush.msra.mxu0 0.0
    %198 = vmatpush.msra.mxu0 0.0
    %199 = vmatpush.msra.mxu0 %v61
    %200 = vmatpush.msra.mxu0 %v60
    %201 = vmatpush.msra.mxu0 %v59
    %202 = vmatpush.msra.mxu0 %v58
    %203 = vmatmul.f32.gmra.mxu0 %v140
    %v204 = vpop.f32.mrf.mxu0
    %v205 = vadd.f32 0.0, %v204
    %206 = vmatmul.f32.gmra.mxu0 %v143
    %v207 = vpop.f32.mrf.mxu0
    %v208 = vadd.f32 0.0, %v207
    %209 = vmatmul.f32.gmra.mxu0 %v146
    %v210 = vpop.f32.mrf.mxu0
    %v211 = vadd.f32 0.0, %v210
    %212 = vmatmul.f32.gmra.mxu0 %v149
    %v213 = vpop.f32.mrf.mxu0
    %v214 = vadd.f32 0.0, %v213
    %215 = vmatmul.f32.gmra.mxu0 %v152
    %v216 = vpop.f32.mrf.mxu0
    %v217 = vadd.f32 0.0, %v216
    %218 = vmatmul.f32.gmra.mxu0 %v155
    %v219 = vpop.f32.mrf.mxu0
    %v220 = vadd.f32 0.0, %v219
    %221 = vmatmul.f32.gmra.mxu0 %v158
    %v222 = vpop.f32.mrf.mxu0
    %v223 = vadd.f32 0.0, %v222
    %224 = vmatmul.f32.gmra.mxu0 %v161
    %v225 = vpop.f32.mrf.mxu0
    %v226 = vadd.f32 0.0, %v225
    %227 = vmatmul.f32.gmra.mxu0 %v164
    %v228 = vpop.f32.mrf.mxu0
    %v229 = vadd.f32 0.0, %v228
    %230 = vmatmul.f32.gmra.mxu0 %v167
    %v231 = vpop.f32.mrf.mxu0
    %v232 = vadd.f32 0.0, %v231
    %233 = vmatmul.f32.gmra.mxu0 %v170
    %v234 = vpop.f32.mrf.mxu0
    %v235 = vadd.f32 0.0, %v234
    %236 = vmatmul.f32.gmra.mxu0 %v173
    %v237 = vpop.f32.mrf.mxu0
    %v238 = vadd.f32 0.0, %v237
    %239 = vmatmul.f32.gmra.mxu0 %v176
    %v240 = vpop.f32.mrf.mxu0
    %v241 = vadd.f32 0.0, %v240
    %242 = vmatmul.f32.gmra.mxu0 %v179
    %v243 = vpop.f32.mrf.mxu0
    %v244 = vadd.f32 0.0, %v243
    %245 = vmatmul.f32.gmra.mxu0 %v182
    %v246 = vpop.f32.mrf.mxu0
    %v247 = vadd.f32 0.0, %v246
    %248 = vmatmul.f32.gmra.mxu0 %v185
    %v249 = vpop.f32.mrf.mxu0
    %v250 = vadd.f32 0.0, %v249
    %251 = vdwg.mxu0
    %v252 = vlaneseq
    %v253 = vand.u32 %v252, 127
    %254 = vmax.xlane.f32.xlu0 %v205
    %v255 = vpop.xlane.xlu0 %254
    %256 = vmax.xlane.f32.xlu0 %v208
    %v257 = vpop.xlane.xlu0 %256
    %258 = vmax.xlane.f32.xlu0 %v211
    %v259 = vpop.xlane.xlu0 %258
    %260 = vmax.xlane.f32.xlu0 %v214
    %v261 = vpop.xlane.xlu0 %260
    %262 = vmax.xlane.f32.xlu0 %v217
    %v263 = vpop.xlane.xlu0 %262
    %264 = vmax.xlane.f32.xlu0 %v220
    %v265 = vpop.xlane.xlu0 %264
    %266 = vmax.xlane.f32.xlu0 %v223
    %v267 = vpop.xlane.xlu0 %266
    %268 = vmax.xlane.f32.xlu0 %v226
    %v269 = vpop.xlane.xlu0 %268
    %270 = vmax.xlane.f32.xlu0 %v229
    %v271 = vpop.xlane.xlu0 %270
    %272 = vmax.xlane.f32.xlu0 %v232
    %v273 = vpop.xlane.xlu0 %272
    %274 = vmax.xlane.f32.xlu0 %v235
    %v275 = vpop.xlane.xlu0 %274
    %276 = vmax.xlane.f32.xlu0 %v238
    %v277 = vpop.xlane.xlu0 %276
    %278 = vmax.xlane.f32.xlu0 %v241
    %v279 = vpop.xlane.xlu0 %278
    %280 = vmax.xlane.f32.xlu0 %v244
    %v281 = vpop.xlane.xlu0 %280
    %282 = vmax.xlane.f32.xlu0 %v247
    %v283 = vpop.xlane.xlu0 %282
    %284 = vmax.xlane.f32.xlu0 %v250
    %v285 = vpop.xlane.xlu0 %284
    %vm286 = vcmp.eq.f32.partialorder %v205, %v255
    %vm287 = vcmp.eq.f32.partialorder %v208, %v257
    %vm288 = vcmp.eq.f32.partialorder %v211, %v259
    %vm289 = vcmp.eq.f32.partialorder %v214, %v261
    %vm290 = vcmp.eq.f32.partialorder %v217, %v263
    %vm291 = vcmp.eq.f32.partialorder %v220, %v265
    %vm292 = vcmp.eq.f32.partialorder %v223, %v267
    %vm293 = vcmp.eq.f32.partialorder %v226, %v269
    %vm294 = vcmp.eq.f32.partialorder %v229, %v271
    %vm295 = vcmp.eq.f32.partialorder %v232, %v273
    %vm296 = vcmp.eq.f32.partialorder %v235, %v275
    %vm297 = vcmp.eq.f32.partialorder %v238, %v277
    %vm298 = vcmp.eq.f32.partialorder %v241, %v279
    %vm299 = vcmp.eq.f32.partialorder %v244, %v281
    %vm300 = vcmp.eq.f32.partialorder %v247, %v283
    %vm301 = vcmp.eq.f32.partialorder %v250, %v285
    %v302 = vsel %vm286, %v253, 128
    %v303 = vsel %vm287, %v253, 128
    %v304 = vsel %vm288, %v253, 128
    %v305 = vsel %vm289, %v253, 128
    %v306 = vsel %vm290, %v253, 128
    %v307 = vsel %vm291, %v253, 128
    %v308 = vsel %vm292, %v253, 128
    %v309 = vsel %vm293, %v253, 128
    %v310 = vsel %vm294, %v253, 128
    %v311 = vsel %vm295, %v253, 128
    %v312 = vsel %vm296, %v253, 128
    %v313 = vsel %vm297, %v253, 128
    %v314 = vsel %vm298, %v253, 128
    %v315 = vsel %vm299, %v253, 128
    %v316 = vsel %vm300, %v253, 128
    %v317 = vsel %vm301, %v253, 128
    %v318 = vand.u32 %v302, 65535
    %v319 = vshra.s32 %v302, 16
    %v320 = vcvt.s32.f32 %v318
    %v321 = vcvt.s32.f32 %v319
    %322 = vmin.xlane.f32.xlu0 %v321
    %v323 = vpop.xlane.xlu0 %322
    %vm324 = vcmp.eq.f32.partialorder %v321, %v323
    %v325 = vsel %vm324, %v320, inf
    %326 = vmin.xlane.f32.xlu0 %v325
    %v327 = vpop.xlane.xlu0 %326
    %v328 = vcvt.f32.s32 %v327
    %v329 = vcvt.f32.s32 %v323
    %v330 = vshll.u32 %v329, 16
    %v331 = vadd.s32 %v330, %v328
    %v332 = vand.u32 %v303, 65535
    %v333 = vshra.s32 %v303, 16
    %v334 = vcvt.s32.f32 %v332
    %v335 = vcvt.s32.f32 %v333
    %336 = vmin.xlane.f32.xlu0 %v335
    %v337 = vpop.xlane.xlu0 %336
    %vm338 = vcmp.eq.f32.partialorder %v335, %v337
    %v339 = vsel %vm338, %v334, inf
    %340 = vmin.xlane.f32.xlu0 %v339
    %v341 = vpop.xlane.xlu0 %340
    %v342 = vcvt.f32.s32 %v341
    %v343 = vcvt.f32.s32 %v337
    %v344 = vshll.u32 %v343, 16
    %v345 = vadd.s32 %v344, %v342
    %v346 = vand.u32 %v304, 65535
    %v347 = vshra.s32 %v304, 16
    %v348 = vcvt.s32.f32 %v346
    %v349 = vcvt.s32.f32 %v347
    %350 = vmin.xlane.f32.xlu0 %v349
    %v351 = vpop.xlane.xlu0 %350
    %vm352 = vcmp.eq.f32.partialorder %v349, %v351
    %v353 = vsel %vm352, %v348, inf
    %354 = vmin.xlane.f32.xlu0 %v353
    %v355 = vpop.xlane.xlu0 %354
    %v356 = vcvt.f32.s32 %v355
    %v357 = vcvt.f32.s32 %v351
    %v358 = vshll.u32 %v357, 16
    %v359 = vadd.s32 %v358, %v356
    %v360 = vand.u32 %v305, 65535
    %v361 = vshra.s32 %v305, 16
    %v362 = vcvt.s32.f32 %v360
    %v363 = vcvt.s32.f32 %v361
    %364 = vmin.xlane.f32.xlu0 %v363
    %v365 = vpop.xlane.xlu0 %364
    %vm366 = vcmp.eq.f32.partialorder %v363, %v365
    %v367 = vsel %vm366, %v362, inf
    %368 = vmin.xlane.f32.xlu0 %v367
    %v369 = vpop.xlane.xlu0 %368
    %v370 = vcvt.f32.s32 %v369
    %v371 = vcvt.f32.s32 %v365
    %v372 = vshll.u32 %v371, 16
    %v373 = vadd.s32 %v372, %v370
    %v374 = vand.u32 %v306, 65535
    %v375 = vshra.s32 %v306, 16
    %v376 = vcvt.s32.f32 %v374
    %v377 = vcvt.s32.f32 %v375
    %378 = vmin.xlane.f32.xlu0 %v377
    %v379 = vpop.xlane.xlu0 %378
    %vm380 = vcmp.eq.f32.partialorder %v377, %v379
    %v381 = vsel %vm380, %v376, inf
    %382 = vmin.xlane.f32.xlu0 %v381
    %v383 = vpop.xlane.xlu0 %382
    %v384 = vcvt.f32.s32 %v383
    %v385 = vcvt.f32.s32 %v379
    %v386 = vshll.u32 %v385, 16
    %v387 = vadd.s32 %v386, %v384
    %v388 = vand.u32 %v307, 65535
    %v389 = vshra.s32 %v307, 16
    %v390 = vcvt.s32.f32 %v388
    %v391 = vcvt.s32.f32 %v389
    %392 = vmin.xlane.f32.xlu0 %v391
    %v393 = vpop.xlane.xlu0 %392
    %vm394 = vcmp.eq.f32.partialorder %v391, %v393
    %v395 = vsel %vm394, %v390, inf
    %396 = vmin.xlane.f32.xlu0 %v395
    %v397 = vpop.xlane.xlu0 %396
    %v398 = vcvt.f32.s32 %v397
    %v399 = vcvt.f32.s32 %v393
    %v400 = vshll.u32 %v399, 16
    %v401 = vadd.s32 %v400, %v398
    %v402 = vand.u32 %v308, 65535
    %v403 = vshra.s32 %v308, 16
    %v404 = vcvt.s32.f32 %v402
    %v405 = vcvt.s32.f32 %v403
    %406 = vmin.xlane.f32.xlu0 %v405
    %v407 = vpop.xlane.xlu0 %406
    %vm408 = vcmp.eq.f32.partialorder %v405, %v407
    %v409 = vsel %vm408, %v404, inf
    %410 = vmin.xlane.f32.xlu0 %v409
    %v411 = vpop.xlane.xlu0 %410
    %v412 = vcvt.f32.s32 %v411
    %v413 = vcvt.f32.s32 %v407
    %v414 = vshll.u32 %v413, 16
    %v415 = vadd.s32 %v414, %v412
    %v416 = vand.u32 %v309, 65535
    %v417 = vshra.s32 %v309, 16
    %v418 = vcvt.s32.f32 %v416
    %v419 = vcvt.s32.f32 %v417
    %420 = vmin.xlane.f32.xlu0 %v419
    %v421 = vpop.xlane.xlu0 %420
    %vm422 = vcmp.eq.f32.partialorder %v419, %v421
    %v423 = vsel %vm422, %v418, inf
    %424 = vmin.xlane.f32.xlu0 %v423
    %v425 = vpop.xlane.xlu0 %424
    %v426 = vcvt.f32.s32 %v425
    %v427 = vcvt.f32.s32 %v421
    %v428 = vshll.u32 %v427, 16
    %v429 = vadd.s32 %v428, %v426
    %v430 = vand.u32 %v310, 65535
    %v431 = vshra.s32 %v310, 16
    %v432 = vcvt.s32.f32 %v430
    %v433 = vcvt.s32.f32 %v431
    %434 = vmin.xlane.f32.xlu0 %v433
    %v435 = vpop.xlane.xlu0 %434
    %vm436 = vcmp.eq.f32.partialorder %v433, %v435
    %v437 = vsel %vm436, %v432, inf
    %438 = vmin.xlane.f32.xlu0 %v437
    %v439 = vpop.xlane.xlu0 %438
    %v440 = vcvt.f32.s32 %v439
    %v441 = vcvt.f32.s32 %v435
    %v442 = vshll.u32 %v441, 16
    %v443 = vadd.s32 %v442, %v440
    %v444 = vand.u32 %v311, 65535
    %v445 = vshra.s32 %v311, 16
    %v446 = vcvt.s32.f32 %v444
    %v447 = vcvt.s32.f32 %v445
    %448 = vmin.xlane.f32.xlu0 %v447
    %v449 = vpop.xlane.xlu0 %448
    %vm450 = vcmp.eq.f32.partialorder %v447, %v449
    %v451 = vsel %vm450, %v446, inf
    %452 = vmin.xlane.f32.xlu0 %v451
    %v453 = vpop.xlane.xlu0 %452
    %v454 = vcvt.f32.s32 %v453
    %v455 = vcvt.f32.s32 %v449
    %v456 = vshll.u32 %v455, 16
    %v457 = vadd.s32 %v456, %v454
    %v458 = vand.u32 %v312, 65535
    %v459 = vshra.s32 %v312, 16
    %v460 = vcvt.s32.f32 %v458
    %v461 = vcvt.s32.f32 %v459
    %462 = vmin.xlane.f32.xlu0 %v461
    %v463 = vpop.xlane.xlu0 %462
    %vm464 = vcmp.eq.f32.partialorder %v461, %v463
    %v465 = vsel %vm464, %v460, inf
    %466 = vmin.xlane.f32.xlu0 %v465
    %v467 = vpop.xlane.xlu0 %466
    %v468 = vcvt.f32.s32 %v467
    %v469 = vcvt.f32.s32 %v463
    %v470 = vshll.u32 %v469, 16
    %v471 = vadd.s32 %v470, %v468
    %v472 = vand.u32 %v313, 65535
    %v473 = vshra.s32 %v313, 16
    %v474 = vcvt.s32.f32 %v472
    %v475 = vcvt.s32.f32 %v473
    %476 = vmin.xlane.f32.xlu0 %v475
    %v477 = vpop.xlane.xlu0 %476
    %vm478 = vcmp.eq.f32.partialorder %v475, %v477
    %v479 = vsel %vm478, %v474, inf
    %480 = vmin.xlane.f32.xlu0 %v479
    %v481 = vpop.xlane.xlu0 %480
    %v482 = vcvt.f32.s32 %v481
    %v483 = vcvt.f32.s32 %v477
    %v484 = vshll.u32 %v483, 16
    %v485 = vadd.s32 %v484, %v482
    %v486 = vand.u32 %v314, 65535
    %v487 = vshra.s32 %v314, 16
    %v488 = vcvt.s32.f32 %v486
    %v489 = vcvt.s32.f32 %v487
    %490 = vmin.xlane.f32.xlu0 %v489
    %v491 = vpop.xlane.xlu0 %490
    %vm492 = vcmp.eq.f32.partialorder %v489, %v491
    %v493 = vsel %vm492, %v488, inf
    %494 = vmin.xlane.f32.xlu0 %v493
    %v495 = vpop.xlane.xlu0 %494
    %v496 = vcvt.f32.s32 %v495
    %v497 = vcvt.f32.s32 %v491
    %v498 = vshll.u32 %v497, 16
    %v499 = vadd.s32 %v498, %v496
    %v500 = vand.u32 %v315, 65535
    %v501 = vshra.s32 %v315, 16
    %v502 = vcvt.s32.f32 %v500
    %v503 = vcvt.s32.f32 %v501
    %504 = vmin.xlane.f32.xlu0 %v503
    %v505 = vpop.xlane.xlu0 %504
    %vm506 = vcmp.eq.f32.partialorder %v503, %v505
    %v507 = vsel %vm506, %v502, inf
    %508 = vmin.xlane.f32.xlu0 %v507
    %v509 = vpop.xlane.xlu0 %508
    %v510 = vcvt.f32.s32 %v509
    %v511 = vcvt.f32.s32 %v505
    %v512 = vshll.u32 %v511, 16
    %v513 = vadd.s32 %v512, %v510
    %v514 = vand.u32 %v316, 65535
    %v515 = vshra.s32 %v316, 16
    %v516 = vcvt.s32.f32 %v514
    %v517 = vcvt.s32.f32 %v515
    %518 = vmin.xlane.f32.xlu0 %v517
    %v519 = vpop.xlane.xlu0 %518
    %vm520 = vcmp.eq.f32.partialorder %v517, %v519
    %v521 = vsel %vm520, %v516, inf
    %522 = vmin.xlane.f32.xlu0 %v521
    %v523 = vpop.xlane.xlu0 %522
    %v524 = vcvt.f32.s32 %v523
    %v525 = vcvt.f32.s32 %v519
    %v526 = vshll.u32 %v525, 16
    %v527 = vadd.s32 %v526, %v524
    %v528 = vand.u32 %v317, 65535
    %v529 = vshra.s32 %v317, 16
    %v530 = vcvt.s32.f32 %v528
    %v531 = vcvt.s32.f32 %v529
    %532 = vmin.xlane.f32.xlu0 %v531
    %v533 = vpop.xlane.xlu0 %532
    %vm534 = vcmp.eq.f32.partialorder %v531, %v533
    %v535 = vsel %vm534, %v530, inf
    %536 = vmin.xlane.f32.xlu0 %v535
    %v537 = vpop.xlane.xlu0 %536
    %v538 = vcvt.f32.s32 %v537
    %v539 = vcvt.f32.s32 %v533
    %v540 = vshll.u32 %v539, 16
    %v541 = vadd.s32 %v540, %v538
    %v542 = vlaneseq
    %v543 = vshrl.u32 %v542, 7
    %v544 = vadd.s32 %v543, 8
    %v545 = vadd.s32 %v543, 16
    %v546 = vadd.s32 %v543, 24
    %v547 = vadd.s32 %v543, 32
    %v548 = vadd.s32 %v543, 40
    %v549 = vadd.s32 %v543, 48
    %v550 = vadd.s32 %v543, 56
    %v551 = vadd.s32 %v543, 64
    %v552 = vadd.s32 %v543, 72
    %v553 = vadd.s32 %v543, 80
    %v554 = vadd.s32 %v543, 88
    %v555 = vadd.s32 %v543, 96
    %v556 = vadd.s32 %v543, 104
    %v557 = vadd.s32 %v543, 112
    %v558 = vadd.s32 %v543, 120
    %vm559 = vcmp.eq.s32.totalorder %v543, 0
    %vm560 = vcmp.eq.s32.totalorder %v544, 0
    %vm561 = vcmp.eq.s32.totalorder %v545, 0
    %vm562 = vcmp.eq.s32.totalorder %v546, 0
    %vm563 = vcmp.eq.s32.totalorder %v547, 0
    %vm564 = vcmp.eq.s32.totalorder %v548, 0
    %vm565 = vcmp.eq.s32.totalorder %v549, 0
    %vm566 = vcmp.eq.s32.totalorder %v550, 0
    %vm567 = vcmp.eq.s32.totalorder %v551, 0
    %vm568 = vcmp.eq.s32.totalorder %v552, 0
    %vm569 = vcmp.eq.s32.totalorder %v553, 0
    %vm570 = vcmp.eq.s32.totalorder %v554, 0
    %vm571 = vcmp.eq.s32.totalorder %v555, 0
    %vm572 = vcmp.eq.s32.totalorder %v556, 0
    %vm573 = vcmp.eq.s32.totalorder %v557, 0
    %vm574 = vcmp.eq.s32.totalorder %v558, 0
    %v575 = vsel %vm559, %v331, 0
    %v576 = vsel %vm560, %v345, 0
    %v577 = vsel %vm561, %v359, 0
    %v578 = vsel %vm562, %v373, 0
    %v579 = vsel %vm563, %v387, 0
    %v580 = vsel %vm564, %v401, 0
    %v581 = vsel %vm565, %v415, 0
    %v582 = vsel %vm566, %v429, 0
    %v583 = vsel %vm567, %v443, 0
    %v584 = vsel %vm568, %v457, 0
    %v585 = vsel %vm569, %v471, 0
    %v586 = vsel %vm570, %v485, 0
    %v587 = vsel %vm571, %v499, 0
    %v588 = vsel %vm572, %v513, 0
    %v589 = vsel %vm573, %v527, 0
    %v590 = vsel %vm574, %v541, 0
    %v591 = vadd.s32 %v575, %v579
    %v592 = vadd.s32 %v576, %v580
    %v593 = vadd.s32 %v577, %v581
    %v594 = vadd.s32 %v578, %v582
    %v595 = vadd.s32 %v591, %v583
    %v596 = vadd.s32 %v592, %v584
    %v597 = vadd.s32 %v593, %v585
    %v598 = vadd.s32 %v594, %v586
    %v599 = vadd.s32 %v595, %v587
    %v600 = vadd.s32 %v596, %v588
    %v601 = vadd.s32 %v597, %v589
    %v602 = vadd.s32 %v598, %v590
    %v603 = vadd.s32 %v599, %v600
    %v604 = vadd.s32 %v601, %v602
    %v605 = vadd.s32 %v603, %v604
    %v606 = vrot.slane %v605, 4
    %v607 = vadd.s32 %v605, %v606
    %v608 = vrot.slane %v607, 2
    %v609 = vadd.s32 %v607, %v608
    %v610 = vrot.slane %v609, 1
    %v611 = vadd.s32 %v609, %v610
    %vm612 = vcmp.eq.s32.totalorder %v253, 0
    %v613 = vsel %vm612, %v611, 0
    %vm614 = vcmp.eq.s32.totalorder %v543, %v611
    %vm615 = vcmp.eq.s32.totalorder %v544, %v611
    %vm616 = vcmp.eq.s32.totalorder %v545, %v611
    %vm617 = vcmp.eq.s32.totalorder %v546, %v611
    %vm618 = vcmp.eq.s32.totalorder %v547, %v611
    %vm619 = vcmp.eq.s32.totalorder %v548, %v611
    %vm620 = vcmp.eq.s32.totalorder %v549, %v611
    %vm621 = vcmp.eq.s32.totalorder %v550, %v611
    %vm622 = vcmp.eq.s32.totalorder %v551, %v611
    %vm623 = vcmp.eq.s32.totalorder %v552, %v611
    %vm624 = vcmp.eq.s32.totalorder %v553, %v611
    %vm625 = vcmp.eq.s32.totalorder %v554, %v611
    %vm626 = vcmp.eq.s32.totalorder %v555, %v611
    %vm627 = vcmp.eq.s32.totalorder %v556, %v611
    %vm628 = vcmp.eq.s32.totalorder %v557, %v611
    %vm629 = vcmp.eq.s32.totalorder %v558, %v611
    %v630 = vsel %vm614, %v331, 0
    %v631 = vsel %vm615, %v345, 0
    %v632 = vsel %vm616, %v359, 0
    %v633 = vsel %vm617, %v373, 0
    %v634 = vsel %vm618, %v387, 0
    %v635 = vsel %vm619, %v401, 0
    %v636 = vsel %vm620, %v415, 0
    %v637 = vsel %vm621, %v429, 0
    %v638 = vsel %vm622, %v443, 0
    %v639 = vsel %vm623, %v457, 0
    %v640 = vsel %vm624, %v471, 0
    %v641 = vsel %vm625, %v485, 0
    %v642 = vsel %vm626, %v499, 0
    %v643 = vsel %vm627, %v513, 0
    %v644 = vsel %vm628, %v527, 0
    %v645 = vsel %vm629, %v541, 0
    %v646 = vadd.s32 %v630, %v634
    %v647 = vadd.s32 %v631, %v635
    %v648 = vadd.s32 %v632, %v636
    %v649 = vadd.s32 %v633, %v637
    %v650 = vadd.s32 %v646, %v638
    %v651 = vadd.s32 %v647, %v639
    %v652 = vadd.s32 %v648, %v640
    %v653 = vadd.s32 %v649, %v641
    %v654 = vadd.s32 %v650, %v642
    %v655 = vadd.s32 %v651, %v643
    %v656 = vadd.s32 %v652, %v644
    %v657 = vadd.s32 %v653, %v645
    %v658 = vadd.s32 %v654, %v655
    %v659 = vadd.s32 %v656, %v657
    %v660 = vadd.s32 %v658, %v659
    %v661 = vrot.slane %v660, 4
    %v662 = vadd.s32 %v660, %v661
    %v663 = vrot.slane %v662, 2
    %v664 = vadd.s32 %v662, %v663
    %v665 = vrot.slane %v664, 1
    %v666 = vadd.s32 %v664, %v665
    %vm667 = vcmp.eq.s32.totalorder %v253, 1
    %v668 = vsel %vm667, %v666, %v613
    %vm669 = vcmp.eq.s32.totalorder %v543, %v666
    %vm670 = vcmp.eq.s32.totalorder %v544, %v666
    %vm671 = vcmp.eq.s32.totalorder %v545, %v666
    %vm672 = vcmp.eq.s32.totalorder %v546, %v666
    %vm673 = vcmp.eq.s32.totalorder %v547, %v666
    %vm674 = vcmp.eq.s32.totalorder %v548, %v666
    %vm675 = vcmp.eq.s32.totalorder %v549, %v666
    %vm676 = vcmp.eq.s32.totalorder %v550, %v666
    %vm677 = vcmp.eq.s32.totalorder %v551, %v666
    %vm678 = vcmp.eq.s32.totalorder %v552, %v666
    %vm679 = vcmp.eq.s32.totalorder %v553, %v666
    %vm680 = vcmp.eq.s32.totalorder %v554, %v666
    %vm681 = vcmp.eq.s32.totalorder %v555, %v666
    %vm682 = vcmp.eq.s32.totalorder %v556, %v666
    %vm683 = vcmp.eq.s32.totalorder %v557, %v666
    %vm684 = vcmp.eq.s32.totalorder %v558, %v666
    %v685 = vsel %vm669, %v331, 0
    %v686 = vsel %vm670, %v345, 0
    %v687 = vsel %vm671, %v359, 0
    %v688 = vsel %vm672, %v373, 0
    %v689 = vsel %vm673, %v387, 0
    %v690 = vsel %vm674, %v401, 0
    %v691 = vsel %vm675, %v415, 0
    %v692 = vsel %vm676, %v429, 0
    %v693 = vsel %vm677, %v443, 0
    %v694 = vsel %vm678, %v457, 0
    %v695 = vsel %vm679, %v471, 0
    %v696 = vsel %vm680, %v485, 0
    %v697 = vsel %vm681, %v499, 0
    %v698 = vsel %vm682, %v513, 0
    %v699 = vsel %vm683, %v527, 0
    %v700 = vsel %vm684, %v541, 0
    %v701 = vadd.s32 %v685, %v689
    %v702 = vadd.s32 %v686, %v690
    %v703 = vadd.s32 %v687, %v691
    %v704 = vadd.s32 %v688, %v692
    %v705 = vadd.s32 %v701, %v693
    %v706 = vadd.s32 %v702, %v694
    %v707 = vadd.s32 %v703, %v695
    %v708 = vadd.s32 %v704, %v696
    %v709 = vadd.s32 %v705, %v697
    %v710 = vadd.s32 %v706, %v698
    %v711 = vadd.s32 %v707, %v699
    %v712 = vadd.s32 %v708, %v700
    %v713 = vadd.s32 %v709, %v710
    %v714 = vadd.s32 %v711, %v712
    %v715 = vadd.s32 %v713, %v714
    %v716 = vrot.slane %v715, 4
    %v717 = vadd.s32 %v715, %v716
    %v718 = vrot.slane %v717, 2
    %v719 = vadd.s32 %v717, %v718
    %v720 = vrot.slane %v719, 1
    %v721 = vadd.s32 %v719, %v720
    %vm722 = vcmp.eq.s32.totalorder %v253, 2
    %v723 = vsel %vm722, %v721, %v668
    %vm724 = vcmp.eq.s32.totalorder %v543, %v721
    %vm725 = vcmp.eq.s32.totalorder %v544, %v721
    %vm726 = vcmp.eq.s32.totalorder %v545, %v721
    %vm727 = vcmp.eq.s32.totalorder %v546, %v721
    %vm728 = vcmp.eq.s32.totalorder %v547, %v721
    %vm729 = vcmp.eq.s32.totalorder %v548, %v721
    %vm730 = vcmp.eq.s32.totalorder %v549, %v721
    %vm731 = vcmp.eq.s32.totalorder %v550, %v721
    %vm732 = vcmp.eq.s32.totalorder %v551, %v721
    %vm733 = vcmp.eq.s32.totalorder %v552, %v721
    %vm734 = vcmp.eq.s32.totalorder %v553, %v721
    %vm735 = vcmp.eq.s32.totalorder %v554, %v721
    %vm736 = vcmp.eq.s32.totalorder %v555, %v721
    %vm737 = vcmp.eq.s32.totalorder %v556, %v721
    %vm738 = vcmp.eq.s32.totalorder %v557, %v721
    %vm739 = vcmp.eq.s32.totalorder %v558, %v721
    %v740 = vsel %vm724, %v331, 0
    %v741 = vsel %vm725, %v345, 0
    %v742 = vsel %vm726, %v359, 0
    %v743 = vsel %vm727, %v373, 0
    %v744 = vsel %vm728, %v387, 0
    %v745 = vsel %vm729, %v401, 0
    %v746 = vsel %vm730, %v415, 0
    %v747 = vsel %vm731, %v429, 0
    %v748 = vsel %vm732, %v443, 0
    %v749 = vsel %vm733, %v457, 0
    %v750 = vsel %vm734, %v471, 0
    %v751 = vsel %vm735, %v485, 0
    %v752 = vsel %vm736, %v499, 0
    %v753 = vsel %vm737, %v513, 0
    %v754 = vsel %vm738, %v527, 0
    %v755 = vsel %vm739, %v541, 0
    %v756 = vadd.s32 %v740, %v744
    %v757 = vadd.s32 %v741, %v745
    %v758 = vadd.s32 %v742, %v746
    %v759 = vadd.s32 %v743, %v747
    %v760 = vadd.s32 %v756, %v748
    %v761 = vadd.s32 %v757, %v749
    %v762 = vadd.s32 %v758, %v750
    %v763 = vadd.s32 %v759, %v751
    %v764 = vadd.s32 %v760, %v752
    %v765 = vadd.s32 %v761, %v753
    %v766 = vadd.s32 %v762, %v754
    %v767 = vadd.s32 %v763, %v755
    %v768 = vadd.s32 %v764, %v765
    %v769 = vadd.s32 %v766, %v767
    %v770 = vadd.s32 %v768, %v769
    %v771 = vrot.slane %v770, 4
    %v772 = vadd.s32 %v770, %v771
    %v773 = vrot.slane %v772, 2
    %v774 = vadd.s32 %v772, %v773
    %v775 = vrot.slane %v774, 1
    %v776 = vadd.s32 %v774, %v775
    %vm777 = vcmp.eq.s32.totalorder %v253, 3
    %v778 = vsel %vm777, %v776, %v723
    %vm779 = vcmp.eq.s32.totalorder %v543, %v776
    %vm780 = vcmp.eq.s32.totalorder %v544, %v776
    %vm781 = vcmp.eq.s32.totalorder %v545, %v776
    %vm782 = vcmp.eq.s32.totalorder %v546, %v776
    %vm783 = vcmp.eq.s32.totalorder %v547, %v776
    %vm784 = vcmp.eq.s32.totalorder %v548, %v776
    %vm785 = vcmp.eq.s32.totalorder %v549, %v776
    %vm786 = vcmp.eq.s32.totalorder %v550, %v776
    %vm787 = vcmp.eq.s32.totalorder %v551, %v776
    %vm788 = vcmp.eq.s32.totalorder %v552, %v776
    %vm789 = vcmp.eq.s32.totalorder %v553, %v776
    %vm790 = vcmp.eq.s32.totalorder %v554, %v776
    %vm791 = vcmp.eq.s32.totalorder %v555, %v776
    %vm792 = vcmp.eq.s32.totalorder %v556, %v776
    %vm793 = vcmp.eq.s32.totalorder %v557, %v776
    %vm794 = vcmp.eq.s32.totalorder %v558, %v776
    %v795 = vsel %vm779, %v331, 0
    %v796 = vsel %vm780, %v345, 0
    %v797 = vsel %vm781, %v359, 0
    %v798 = vsel %vm782, %v373, 0
    %v799 = vsel %vm783, %v387, 0
    %v800 = vsel %vm784, %v401, 0
    %v801 = vsel %vm785, %v415, 0
    %v802 = vsel %vm786, %v429, 0
    %v803 = vsel %vm787, %v443, 0
    %v804 = vsel %vm788, %v457, 0
    %v805 = vsel %vm789, %v471, 0
    %v806 = vsel %vm790, %v485, 0
    %v807 = vsel %vm791, %v499, 0
    %v808 = vsel %vm792, %v513, 0
    %v809 = vsel %vm793, %v527, 0
    %v810 = vsel %vm794, %v541, 0
    %v811 = vadd.s32 %v795, %v799
    %v812 = vadd.s32 %v796, %v800
    %v813 = vadd.s32 %v797, %v801
    %v814 = vadd.s32 %v798, %v802
    %v815 = vadd.s32 %v811, %v803
    %v816 = vadd.s32 %v812, %v804
    %v817 = vadd.s32 %v813, %v805
    %v818 = vadd.s32 %v814, %v806
    %v819 = vadd.s32 %v815, %v807
    %v820 = vadd.s32 %v816, %v808
    %v821 = vadd.s32 %v817, %v809
    %v822 = vadd.s32 %v818, %v810
    %v823 = vadd.s32 %v819, %v820
    %v824 = vadd.s32 %v821, %v822
    %v825 = vadd.s32 %v823, %v824
    %v826 = vrot.slane %v825, 4
    %v827 = vadd.s32 %v825, %v826
    %v828 = vrot.slane %v827, 2
    %v829 = vadd.s32 %v827, %v828
    %v830 = vrot.slane %v829, 1
    %v831 = vadd.s32 %v829, %v830
    %vm832 = vcmp.eq.s32.totalorder %v253, 4
    %v833 = vsel %vm832, %v831, %v778
    %vm834 = vcmp.eq.s32.totalorder %v543, %v831
    %vm835 = vcmp.eq.s32.totalorder %v544, %v831
    %vm836 = vcmp.eq.s32.totalorder %v545, %v831
    %vm837 = vcmp.eq.s32.totalorder %v546, %v831
    %vm838 = vcmp.eq.s32.totalorder %v547, %v831
    %vm839 = vcmp.eq.s32.totalorder %v548, %v831
    %vm840 = vcmp.eq.s32.totalorder %v549, %v831
    %vm841 = vcmp.eq.s32.totalorder %v550, %v831
    %vm842 = vcmp.eq.s32.totalorder %v551, %v831
    %vm843 = vcmp.eq.s32.totalorder %v552, %v831
    %vm844 = vcmp.eq.s32.totalorder %v553, %v831
    %vm845 = vcmp.eq.s32.totalorder %v554, %v831
    %vm846 = vcmp.eq.s32.totalorder %v555, %v831
    %vm847 = vcmp.eq.s32.totalorder %v556, %v831
    %vm848 = vcmp.eq.s32.totalorder %v557, %v831
    %vm849 = vcmp.eq.s32.totalorder %v558, %v831
    %v850 = vsel %vm834, %v331, 0
    %v851 = vsel %vm835, %v345, 0
    %v852 = vsel %vm836, %v359, 0
    %v853 = vsel %vm837, %v373, 0
    %v854 = vsel %vm838, %v387, 0
    %v855 = vsel %vm839, %v401, 0
    %v856 = vsel %vm840, %v415, 0
    %v857 = vsel %vm841, %v429, 0
    %v858 = vsel %vm842, %v443, 0
    %v859 = vsel %vm843, %v457, 0
    %v860 = vsel %vm844, %v471, 0
    %v861 = vsel %vm845, %v485, 0
    %v862 = vsel %vm846, %v499, 0
    %v863 = vsel %vm847, %v513, 0
    %v864 = vsel %vm848, %v527, 0
    %v865 = vsel %vm849, %v541, 0
    %v866 = vadd.s32 %v850, %v854
    %v867 = vadd.s32 %v851, %v855
    %v868 = vadd.s32 %v852, %v856
    %v869 = vadd.s32 %v853, %v857
    %v870 = vadd.s32 %v866, %v858
    %v871 = vadd.s32 %v867, %v859
    %v872 = vadd.s32 %v868, %v860
    %v873 = vadd.s32 %v869, %v861
    %v874 = vadd.s32 %v870, %v862
    %v875 = vadd.s32 %v871, %v863
    %v876 = vadd.s32 %v872, %v864
    %v877 = vadd.s32 %v873, %v865
    %v878 = vadd.s32 %v874, %v875
    %v879 = vadd.s32 %v876, %v877
    %v880 = vadd.s32 %v878, %v879
    %v881 = vrot.slane %v880, 4
    %v882 = vadd.s32 %v880, %v881
    %v883 = vrot.slane %v882, 2
    %v884 = vadd.s32 %v882, %v883
    %v885 = vrot.slane %v884, 1
    %v886 = vadd.s32 %v884, %v885
    %vm887 = vcmp.eq.s32.totalorder %v253, 5
    %v888 = vsel %vm887, %v886, %v833
    %vm889 = vcmp.eq.s32.totalorder %v543, %v886
    %vm890 = vcmp.eq.s32.totalorder %v544, %v886
    %vm891 = vcmp.eq.s32.totalorder %v545, %v886
    %vm892 = vcmp.eq.s32.totalorder %v546, %v886
    %vm893 = vcmp.eq.s32.totalorder %v547, %v886
    %vm894 = vcmp.eq.s32.totalorder %v548, %v886
    %vm895 = vcmp.eq.s32.totalorder %v549, %v886
    %vm896 = vcmp.eq.s32.totalorder %v550, %v886
    %vm897 = vcmp.eq.s32.totalorder %v551, %v886
    %vm898 = vcmp.eq.s32.totalorder %v552, %v886
    %vm899 = vcmp.eq.s32.totalorder %v553, %v886
    %vm900 = vcmp.eq.s32.totalorder %v554, %v886
    %vm901 = vcmp.eq.s32.totalorder %v555, %v886
    %vm902 = vcmp.eq.s32.totalorder %v556, %v886
    %vm903 = vcmp.eq.s32.totalorder %v557, %v886
    %vm904 = vcmp.eq.s32.totalorder %v558, %v886
    %v905 = vsel %vm889, %v331, 0
    %v906 = vsel %vm890, %v345, 0
    %v907 = vsel %vm891, %v359, 0
    %v908 = vsel %vm892, %v373, 0
    %v909 = vsel %vm893, %v387, 0
    %v910 = vsel %vm894, %v401, 0
    %v911 = vsel %vm895, %v415, 0
    %v912 = vsel %vm896, %v429, 0
    %v913 = vsel %vm897, %v443, 0
    %v914 = vsel %vm898, %v457, 0
    %v915 = vsel %vm899, %v471, 0
    %v916 = vsel %vm900, %v485, 0
    %v917 = vsel %vm901, %v499, 0
    %v918 = vsel %vm902, %v513, 0
    %v919 = vsel %vm903, %v527, 0
    %v920 = vsel %vm904, %v541, 0
    %v921 = vadd.s32 %v905, %v909
    %v922 = vadd.s32 %v906, %v910
    %v923 = vadd.s32 %v907, %v911
    %v924 = vadd.s32 %v908, %v912
    %v925 = vadd.s32 %v921, %v913
    %v926 = vadd.s32 %v922, %v914
    %v927 = vadd.s32 %v923, %v915
    %v928 = vadd.s32 %v924, %v916
    %v929 = vadd.s32 %v925, %v917
    %v930 = vadd.s32 %v926, %v918
    %v931 = vadd.s32 %v927, %v919
    %v932 = vadd.s32 %v928, %v920
    %v933 = vadd.s32 %v929, %v930
    %v934 = vadd.s32 %v931, %v932
    %v935 = vadd.s32 %v933, %v934
    %v936 = vrot.slane %v935, 4
    %v937 = vadd.s32 %v935, %v936
    %v938 = vrot.slane %v937, 2
    %v939 = vadd.s32 %v937, %v938
    %v940 = vrot.slane %v939, 1
    %v941 = vadd.s32 %v939, %v940
    %vm942 = vcmp.eq.s32.totalorder %v253, 6
    %v943 = vsel %vm942, %v941, %v888
    %vm944 = vcmp.eq.s32.totalorder %v543, %v941
    %vm945 = vcmp.eq.s32.totalorder %v544, %v941
    %vm946 = vcmp.eq.s32.totalorder %v545, %v941
    %vm947 = vcmp.eq.s32.totalorder %v546, %v941
    %vm948 = vcmp.eq.s32.totalorder %v547, %v941
    %vm949 = vcmp.eq.s32.totalorder %v548, %v941
    %vm950 = vcmp.eq.s32.totalorder %v549, %v941
    %vm951 = vcmp.eq.s32.totalorder %v550, %v941
    %vm952 = vcmp.eq.s32.totalorder %v551, %v941
    %vm953 = vcmp.eq.s32.totalorder %v552, %v941
    %vm954 = vcmp.eq.s32.totalorder %v553, %v941
    %vm955 = vcmp.eq.s32.totalorder %v554, %v941
    %vm956 = vcmp.eq.s32.totalorder %v555, %v941
    %vm957 = vcmp.eq.s32.totalorder %v556, %v941
    %vm958 = vcmp.eq.s32.totalorder %v557, %v941
    %vm959 = vcmp.eq.s32.totalorder %v558, %v941
    %v960 = vsel %vm944, %v331, 0
    %v961 = vsel %vm945, %v345, 0
    %v962 = vsel %vm946, %v359, 0
    %v963 = vsel %vm947, %v373, 0
    %v964 = vsel %vm948, %v387, 0
    %v965 = vsel %vm949, %v401, 0
    %v966 = vsel %vm950, %v415, 0
    %v967 = vsel %vm951, %v429, 0
    %v968 = vsel %vm952, %v443, 0
    %v969 = vsel %vm953, %v457, 0
    %v970 = vsel %vm954, %v471, 0
    %v971 = vsel %vm955, %v485, 0
    %v972 = vsel %vm956, %v499, 0
    %v973 = vsel %vm957, %v513, 0
    %v974 = vsel %vm958, %v527, 0
    %v975 = vsel %vm959, %v541, 0
    %v976 = vadd.s32 %v960, %v964
    %v977 = vadd.s32 %v961, %v965
    %v978 = vadd.s32 %v962, %v966
    %v979 = vadd.s32 %v963, %v967
    %v980 = vadd.s32 %v976, %v968
    %v981 = vadd.s32 %v977, %v969
    %v982 = vadd.s32 %v978, %v970
    %v983 = vadd.s32 %v979, %v971
    %v984 = vadd.s32 %v980, %v972
    %v985 = vadd.s32 %v981, %v973
    %v986 = vadd.s32 %v982, %v974
    %v987 = vadd.s32 %v983, %v975
    %v988 = vadd.s32 %v984, %v985
    %v989 = vadd.s32 %v986, %v987
    %v990 = vadd.s32 %v988, %v989
    %v991 = vrot.slane %v990, 4
    %v992 = vadd.s32 %v990, %v991
    %v993 = vrot.slane %v992, 2
    %v994 = vadd.s32 %v992, %v993
    %v995 = vrot.slane %v994, 1
    %v996 = vadd.s32 %v994, %v995
    %vm997 = vcmp.eq.s32.totalorder %v253, 7
    %v998 = vsel %vm997, %v996, %v943
    %999 = vst [vmem:[#allocation2] sm:$0x1] %v998
    // Predicated region
    $region22: #{_generate_jit.1} parent=1 // pred_check
      _
    $region23: #{_generate_jit.1} parent=1 // pred_check_branch
      %1001 = sbr.rel (0) target = $region25
    $region24: #{_generate_jit.1} parent=1 // pred_region
      %1003 = vsyncadd [#allocation3], 0
      %s1005 = sshll.u32 [#allocation2], 4
      %s1006 = int_to_ptr.vmem [resolvable:$true] %s1005
      %s1007 = sshll.u32 %s5, 4
      %s1008 = int_to_ptr.hbm [resolvable:$true] %s1007
      %1010 = dma.vmem_to_hbm [thread:$0]  %s1006, 16, %s1008, [#allocation3]
    $region25: #{_generate_jit.1} parent=1 // pred_fallthru
      _
    // Predicated region
    $region26: #{_generate_jit.1} parent=1 // pred_check
      _
    $region27: #{_generate_jit.1} parent=1 // pred_check_branch
      %1012 = sbr.rel (0) target = $region29
    $region28: #{_generate_jit.1} parent=1 // pred_region
      %1014 = dma.done [#allocation3], 16
    $region29: #{_generate_jit.1} parent=1 // pred_fallthru
      _
    %1015 = vsyncpa [#allocation3], 1

</llo_original>
